<compile_context>
chip_gen: v6e
topology: v6e:2x2x1
jax: 0.10.0
libtpu: 0.0.40
codegen_flags: <defaults>
</compile_context>

<pallas_src>
import jax
import jax.numpy as jnp
from jax.experimental import pallas as pl
from jax.experimental.pallas import tpu as pltpu


# ---------------------------------------------------------------------------
# Kernel
# ---------------------------------------------------------------------------

def _linear_kernel(x_ref, w_ref, b_ref, o_ref, acc_ref):
    """One (tm, tn) output tile accumulated over the (innermost) K grid axis."""
    k = pl.program_id(2)

    @pl.when(k == 0)
    def _():
        # Initialize the accumulator with the bias: saves a full (tm, tn) VPU
        # add and the zeros materialization in the finalize branch.
        acc_ref[...] = jnp.broadcast_to(
            b_ref[...].astype(jnp.float32), acc_ref.shape
        )

    # bf16 x bf16 on the MXU, f32 accumulation.
    acc_ref[...] += jnp.dot(
        x_ref[...], w_ref[...], preferred_element_type=jnp.float32
    )

    @pl.when(k == pl.num_programs(2) - 1)
    def _():
        o_ref[...] = acc_ref[...].astype(o_ref.dtype)


# ---------------------------------------------------------------------------
# Helpers
# ---------------------------------------------------------------------------

def _cdiv(a, b):
    return -(-a // b)


def _round_up(a, m):
    return ((a + m - 1) // m) * m


def _near_divisor_tile(dim, tile_max, align):
    """Largest aligned tile <= ~tile_max whose step count matches cdiv(dim,
    tile_max); caps padding waste at one aligned sliver instead of up to ~2x."""
    steps = _cdiv(dim, tile_max)
    return _round_up(_cdiv(dim, steps), align)


def _tpu_defaults():
    """Generation-appropriate tile sizes and VMEM limit (best-effort query)."""
    kind = ""
    try:
        kind = jax.devices()[0].device_kind.lower()
    except Exception:
        pass
    vmem_cap = 128 * 1024 * 1024
    try:
        vmem_cap = int(pltpu.get_tpu_info().vmem_capacity_bytes)
    except Exception:
        pass

    if "v7" in kind or vmem_cap <= 64 * 1024 * 1024:
        # v7x: 64 MiB VMEM per TensorCore -> leave headroom for compiler scratch.
        limit = min(int(0.75 * vmem_cap), 48 * 1024 * 1024)
        return dict(tm=512, tn=1024, tk=1024, vmem_limit=limit)
    if "v6" in kind:
        return dict(tm=1024, tn=1024, tk=1024, vmem_limit=100 * 1024 * 1024)
    if "v5" in kind:
        return dict(tm=512, tn=512, tk=1024, vmem_limit=100 * 1024 * 1024)
    # Unknown TPU: mid-size tiles, conservative limit.
    limit = min(int(0.75 * vmem_cap), 96 * 1024 * 1024)
    return dict(tm=512, tn=1024, tk=1024, vmem_limit=limit)


# ---------------------------------------------------------------------------
# Wrapper
# ---------------------------------------------------------------------------

def custom_linear(x, weights, bias, *, tm=None, tn=None, tk=None,
                  compute_dtype=jnp.bfloat16, vmem_limit_bytes=None):
    """y = x @ weights + bias (forward pass of CustomLinearLayer)."""
    M, K = x.shape
    Kw, N = weights.shape
    assert K == Kw and bias.shape == (N,)
    out_dtype = x.dtype

    cfg = _tpu_defaults()
    tm = tm if tm is not None else cfg["tm"]
    tn = tn if tn is not None else cfg["tn"]
    tk = tk if tk is not None else cfg["tk"]
    vmem_limit_bytes = (
        vmem_limit_bytes if vmem_limit_bytes is not None else cfg["vmem_limit"]
    )

    # Sublane alignment: bf16 packs 16 rows per vreg sublane tile (f32 acc
    # needs 8; 16 covers both).  Lane alignment is 128.
    sub = 16 if jnp.dtype(compute_dtype).itemsize == 2 else 8
    tm = _near_divisor_tile(M, tm, sub)
    tn = _near_divisor_tile(N, tn, 128)
    tk = _near_divisor_tile(K, tk, 128)

    grid_m = _cdiv(M, tm)
    grid_n = _cdiv(N, tn)
    grid_k = _cdiv(K, tk)

    # Cast MXU operands to bf16 (native MXU dtype on v5e/v6e/v7x; f32 matmul
    # is emulated at a fraction of peak and v7x has no f32 MXU path at all).
    xc = x if x.dtype == compute_dtype else x.astype(compute_dtype)
    wc = weights if weights.dtype == compute_dtype else weights.astype(compute_dtype)
    bc = bias.astype(jnp.float32).reshape(1, N)

    # Only the contraction axis needs zero padding for correctness: garbage in
    # out-of-bounds M/N blocks lands only in masked output rows/cols.
    Kp = tk * grid_k
    if Kp != K:
        xc = jnp.pad(xc, ((0, 0), (0, Kp - K)))
        wc = jnp.pad(wc, ((0, Kp - K), (0, 0)))

    if grid_m >= 2 or grid_n == 1:
        grid = (grid_m, grid_n, grid_k)
        x_map = lambda i, j, k: (i, k)
        w_map = lambda i, j, k: (k, j)
        b_map = lambda i, j, k: (0, j)
        o_map = lambda i, j, k: (i, j)
    else:
        # N-major: leading "parallel" axis gets >= 2 steps so both v7x
        # TensorCores have work even when M fits in a single tile.
        grid = (grid_n, grid_m, grid_k)
        x_map = lambda j, i, k: (i, k)
        w_map = lambda j, i, k: (k, j)
        b_map = lambda j, i, k: (0, j)
        o_map = lambda j, i, k: (i, j)

    return pl.pallas_call(
        _linear_kernel,
        out_shape=jax.ShapeDtypeStruct((M, N), out_dtype),
        grid_spec=pltpu.PrefetchScalarGridSpec(
            num_scalar_prefetch=0,
            grid=grid,
            in_specs=[
                pl.BlockSpec((tm, tk), x_map),   # x tile (bf16)
                pl.BlockSpec((tk, tn), w_map),   # W tile (bf16)
                pl.BlockSpec((1, tn), b_map),    # bias tile (f32)
            ],
            out_specs=pl.BlockSpec((tm, tn), o_map),
            scratch_shapes=[pltpu.VMEM((tm, tn), jnp.float32)],
        ),
        compiler_params=pltpu.CompilerParams(
            dimension_semantics=("parallel", "parallel", "arbitrary"),
            vmem_limit_bytes=vmem_limit_bytes,
        ),
    )(xc, wc, bc)


# ---------------------------------------------------------------------------
# Self-test
# ---------------------------------------------------------------------------

def _reference(x, w, b):
    # Reference matching the kernel's bf16-operand / f32-accumulation math.
    xb = x.astype(jnp.bfloat16).astype(jnp.float32)
    wb = w.astype(jnp.bfloat16).astype(jnp.float32)
    return jnp.dot(xb, wb, precision=jax.lax.Precision.HIGHEST) + b


if __name__ == "__main__":
    key = jax.random.PRNGKey(0)
    kx, kw, kx2, kw2, kb2 = jax.random.split(key, 5)

    # Small shapes consistent with the module: M rows of in_size features.
    M, in_size, out_size = 16, 256, 256
    x = jax.random.normal(kx, (M, in_size), dtype=jnp.float32)
    weights = jax.random.normal(kw, (in_size, out_size), dtype=jnp.float32)
    bias = jnp.zeros((out_size,), dtype=jnp.float32)

    y = jax.block_until_ready(custom_linear(x, weights, bias))
    y_ref = _reference(x, weights, bias)
    assert y.shape == (M, out_size)
    assert jnp.allclose(y, y_ref, atol=1e-2, rtol=1e-2)

    # Exercise the multi-step grid with non-dividing M/N and multiple K steps.
    M2, K2, N2 = 200, 384, 640
    x2 = jax.random.normal(kx2, (M2, K2), dtype=jnp.float32)
    w2 = jax.random.normal(kw2, (K2, N2), dtype=jnp.float32)
    b2 = jax.random.normal(kb2, (N2,), dtype=jnp.float32)
    y2 = jax.block_until_ready(custom_linear(x2, w2, b2, tm=64, tn=256, tk=128))
    y2_ref = _reference(x2, w2, b2)
    assert y2.shape == (M2, N2)
    assert jnp.allclose(y2, y2_ref, atol=5e-2, rtol=1e-2)

    print("KERNEL_OK")
</pallas_src>

<mosaic_0001>
module attributes {stable_mosaic.version = 11 : i64} {
  func.func @_linear_kernel(%arg0: i32, %arg1: i32, %arg2: i32, %arg3: memref<16x256xbf16, #tpu.memory_space<vmem>>, %arg4: memref<256x256xbf16, #tpu.memory_space<vmem>>, %arg5: memref<1x256xf32, #tpu.memory_space<vmem>>, %arg6: memref<16x256xf32, #tpu.memory_space<vmem>>, %arg7: memref<16x256xf32, #tpu.memory_space<vmem>>) attributes {dimension_semantics = [#tpu.dimension_semantics<parallel>, #tpu.dimension_semantics<parallel>, #tpu.dimension_semantics<arbitrary>], iteration_bounds = array<i64: 1, 1, 1>, scalar_prefetch = 0 : i64, scratch_operands = 1 : i64, tpu.core_type = #tpu.core_type<tc>, window_params = [{transform_indices = @transform_0, window_bounds = array<i64: 16, 256>}, {transform_indices = @transform_1, window_bounds = array<i64: 256, 256>}, {transform_indices = @transform_2, window_bounds = array<i64: 1, 256>}, {transform_indices = @transform_3, window_bounds = array<i64: 16, 256>}]} {
    %c0_i32 = arith.constant 0 : i32
    %0 = arith.cmpi eq, %arg2, %c0_i32 : i32
    %1 = arith.extui %0 : i1 to i32
    %c0_i32_0 = arith.constant 0 : i32
    %2 = arith.cmpi ne, %1, %c0_i32_0 : i32
    scf.if %2 {
      %c0_10 = arith.constant 0 : index
      %c0_11 = arith.constant 0 : index
      %12 = vector.load %arg5[%c0_10, %c0_11] : memref<1x256xf32, #tpu.memory_space<vmem>>, vector<1x256xf32>
      %13 = vector.shape_cast %12 : vector<1x256xf32> to vector<1x256xf32>
      %14 = vector.broadcast %13 : vector<1x256xf32> to vector<16x256xf32>
      %c0_12 = arith.constant 0 : index
      %c0_13 = arith.constant 0 : index
      %15 = vector.load %arg7[%c0_12, %c0_13] : memref<16x256xf32, #tpu.memory_space<vmem>>, vector<16x256xf32>
      tpu.vector_store %arg7[%c0_12, %c0_13], %14 {strides = array<i32>} : memref<16x256xf32, #tpu.memory_space<vmem>>, vector<16x256xf32>,
    } else {
    }
    %c0 = arith.constant 0 : index
    %c0_1 = arith.constant 0 : index
    %3 = vector.load %arg7[%c0, %c0_1] : memref<16x256xf32, #tpu.memory_space<vmem>>, vector<16x256xf32>
    %c0_2 = arith.constant 0 : index
    %c0_3 = arith.constant 0 : index
    %4 = vector.load %arg3[%c0_2, %c0_3] : memref<16x256xbf16, #tpu.memory_space<vmem>>, vector<16x256xbf16>
    %c0_4 = arith.constant 0 : index
    %c0_5 = arith.constant 0 : index
    %5 = vector.load %arg4[%c0_4, %c0_5] : memref<256x256xbf16, #tpu.memory_space<vmem>>, vector<256x256xbf16>
    %cst = arith.constant dense<0.000000e+00> : vector<16x256xf32>
    %6 = tpu.matmul %4, %5, %cst {dimension_numbers = #tpu.dot_dimension_numbers<[1], [0], [0], [1], [0, 0, 1, 1], [], []>} : vector<16x256xbf16>, vector<256x256xbf16>, vector<16x256xf32> -> vector<16x256xf32>
    %7 = arith.addf %3, %6 : vector<16x256xf32>
    %c0_6 = arith.constant 0 : index
    %c0_7 = arith.constant 0 : index
    %8 = vector.load %arg7[%c0_6, %c0_7] : memref<16x256xf32, #tpu.memory_space<vmem>>, vector<16x256xf32>
    tpu.vector_store %arg7[%c0_6, %c0_7], %7 {strides = array<i32>} : memref<16x256xf32, #tpu.memory_space<vmem>>, vector<16x256xf32>,
    %c0_i32_8 = arith.constant 0 : i32
    %9 = arith.cmpi eq, %arg2, %c0_i32_8 : i32
    %10 = arith.extui %9 : i1 to i32
    %c0_i32_9 = arith.constant 0 : i32
    %11 = arith.cmpi ne, %10, %c0_i32_9 : i32
    scf.if %11 {
      %c0_10 = arith.constant 0 : index
      %c0_11 = arith.constant 0 : index
      %12 = vector.load %arg7[%c0_10, %c0_11] : memref<16x256xf32, #tpu.memory_space<vmem>>, vector<16x256xf32>
      %c0_12 = arith.constant 0 : index
      %c0_13 = arith.constant 0 : index
      %13 = vector.load %arg6[%c0_12, %c0_13] : memref<16x256xf32, #tpu.memory_space<vmem>>, vector<16x256xf32>
      tpu.vector_store %arg6[%c0_12, %c0_13], %12 {strides = array<i32>} : memref<16x256xf32, #tpu.memory_space<vmem>>, vector<16x256xf32>,
    } else {
    }
    return
  }
  func.func @transform_0(%arg0: i32, %arg1: i32, %arg2: i32) -> (i32, i32) {
    %c0_i32 = arith.constant 0 : i32
    return %arg0, %arg2 : i32, i32
  }
  func.func @transform_1(%arg0: i32, %arg1: i32, %arg2: i32) -> (i32, i32) {
    %c0_i32 = arith.constant 0 : i32
    return %arg2, %arg1 : i32, i32
  }
  func.func @transform_2(%arg0: i32, %arg1: i32, %arg2: i32) -> (i32, i32) {
    %c0_i32 = arith.constant 0 : i32
    %c0_i32_0 = arith.constant 0 : i32
    return %c0_i32, %arg1 : i32, i32
  }
  func.func @transform_3(%arg0: i32, %arg1: i32, %arg2: i32) -> (i32, i32) {
    %c0_i32 = arith.constant 0 : i32
    return %arg0, %arg1 : i32, i32
  }
}

</mosaic_0001>

<llo_original>
// kernel: tpu_custom_call.1
$region0: #{tpu_custom_call.1}
  #allocation0 [shape = 'u32[]', space=smem, size = 0x4, offset = 0x4, fixed_abs, tag = 'smem constant byte address 0x4 - core index']
  #allocation1 [shape = 'u32[144,128]{1,0:T(1,128)}', space=vmem, size = 0x12000, scoped, tag = 'internal scratch']
  #allocation2 [shape = 'f32[16,256]{1,0:T(8,128)}', space=vmem, size = 0x4000, scoped, tag = 'scratch operand']
  %s0 = inlined_call_operand.hbm [shape: bf16[16,256], index: 0, kind: input, shape index: {}]
  %s1 = inlined_call_operand.hbm [shape: bf16[256,256], index: 1, kind: input, shape index: {}]
  %s2 = inlined_call_operand.vmem [shape: f32[1,256], index: 2, kind: input, shape index: {}]
  %s3 = inlined_call_operand.hbm [shape: f32[16,256], index: 3, kind: output, shape index: {}]
  %s4 = sld [smem:[#allocation0]]
  $region38: #{tpu_custom_call.1} parent=0
    _
  %s6 = ssub.s32 1, %s4
  %s7 = scalar_select 0, %s6, %s4
  $region1: #{tpu_custom_call.1} parent=0
    #allocation3 [shape = 'u8[8192]{0}', space=vmem, size = 0x2000, scoped, tag = 'input window, operand 0, single buffered']
    #allocation4 [shape = 's32[1]{0}', space=sflag, size = 0x4, scoped, tag = 'scoped memory for tpu_custom_call.1']
    #allocation5 [shape = 's32[1]{0}', space=sflag, size = 0x4, scoped, tag = 'scoped memory for tpu_custom_call.1']
    #allocation6 [shape = 'u8[131072]{0}', space=vmem, size = 0x20000, scoped, tag = 'input window, operand 1, single buffered']
    #allocation7 [shape = 's32[1]{0}', space=sflag, size = 0x4, scoped, tag = 'scoped memory for tpu_custom_call.1']
    #allocation8 [shape = 'u8[16384]{0}', space=vmem, size = 0x4000, scoped, tag = 'output window, operand 0, single buffered']
    %8 = vsyncpa [#allocation4], 0
    %9 = vsyncpa [#allocation7], 0
    %10 = vsyncpa [#allocation5], 0
    // Predicated region
    $region2: #{tpu_custom_call.1} parent=1 // pred_check
      _
    $region3: #{tpu_custom_call.1} parent=1 // pred_check_branch
      %12 = sbr.rel (0) target = $region5
    $region4: #{tpu_custom_call.1} parent=1 // pred_region
      %s14 = ssub.s32 256, 256
      %15 = vsyncadd [#allocation4], %s14
      %s16 = sshll.u32 [#allocation3], 4
      %s17 = int_to_ptr.vmem [resolvable:$true] %s16
      %22 = dma.hbm_to_vmem [thread:$0]  %s0, 256, %s17, [#allocation4], 128, 128, 8
    $region5: #{tpu_custom_call.1} parent=1 // pred_fallthru
      _
    // Predicated region
    $region6: #{tpu_custom_call.1} parent=1 // pred_check
      _
    $region7: #{tpu_custom_call.1} parent=1 // pred_check_branch
      %24 = sbr.rel (0) target = $region9
    $region8: #{tpu_custom_call.1} parent=1 // pred_region
      %s26 = ssub.s32 4096, 4096
      %27 = vsyncadd [#allocation7], %s26
      %s28 = sshll.u32 [#allocation6], 4
      %s29 = int_to_ptr.vmem [resolvable:$true] %s28
      %34 = dma.hbm_to_vmem [thread:$0]  %s1, 4096, %s29, [#allocation7], 128, 128, 8
    $region9: #{tpu_custom_call.1} parent=1 // pred_fallthru
      _
    // Predicated region
    $region10: #{tpu_custom_call.1} parent=1 // pred_check
      _
    $region11: #{tpu_custom_call.1} parent=1 // pred_check_branch
      %36 = sbr.rel (0) target = $region13
    $region12: #{tpu_custom_call.1} parent=1 // pred_region
      _
    $region13: #{tpu_custom_call.1} parent=1 // pred_fallthru
      _
    // Predicated region
    $region14: #{tpu_custom_call.1} parent=1 // pred_check
      _
    $region15: #{tpu_custom_call.1} parent=1 // pred_check_branch
      %38 = sbr.rel (0) target = $region17
    $region16: #{tpu_custom_call.1} parent=1 // pred_region
      %39 = dma.done [#allocation4], 256
    $region17: #{tpu_custom_call.1} parent=1 // pred_fallthru
      _
    // Predicated region
    $region18: #{tpu_custom_call.1} parent=1 // pred_check
      _
    $region19: #{tpu_custom_call.1} parent=1 // pred_check_branch
      %41 = sbr.rel (0) target = $region21
    $region20: #{tpu_custom_call.1} parent=1 // pred_region
      %42 = dma.done [#allocation7], 4096
    $region21: #{tpu_custom_call.1} parent=1 // pred_fallthru
      _
    %p43 = scmp.eq.s32.totalorder 0, 0
    // Predicated region
    $region22: #{tpu_custom_call.1} parent=1 // pred_check
      %p44 = pneg %p43
    $region23: #{tpu_custom_call.1} parent=1 // pred_check_branch
      %46 = sbr.rel (%p44) target = $region25
    $region24: #{tpu_custom_call.1} parent=1 // pred_region
      %v47 = vld [vmem:[%s2] sm:$0x3]
      %v49 = vlaneseq
      %v50 = vshrl.u32 %v49, 7
      %v51 = vsub.s32 0, %v50
      %v52 = vrot.slane %v47, %v51
      %v53 = vlaneseq
      %v54 = vshrl.u32 %v53, 7
      %v55 = vsub.s32 1, %v54
      %v56 = vrot.slane %v47, %v55
      %59 = vst [vmem:[#allocation2] sm:$0xff] %v52
      %60 = vst [vmem:[#allocation2 + $0x8] sm:$0xff] %v56
      %61 = vst [vmem:[#allocation2 + $0x10] sm:$0xff] %v52
      %62 = vst [vmem:[#allocation2 + $0x18] sm:$0xff] %v56
    $region25: #{tpu_custom_call.1} parent=1 // pred_fallthru
      _
    %v63 = vld [vmem:[#allocation2] sm:$0xff]
    %v64 = vld [vmem:[#allocation2 + $0x8] sm:$0xff]
    %v65 = vld [vmem:[#allocation2 + $0x10] sm:$0xff]
    %v66 = vld [vmem:[#allocation2 + $0x18] sm:$0xff]
    %v67 = vld [vmem:[#allocation3] sm:$0xff]
    %v68 = vld [vmem:[#allocation3 + $0x8] sm:$0xff]
    %v69 = vld [vmem:[#allocation6] sm:$0xff]
    %v70 = vld [vmem:[#allocation6 + $0x8] sm:$0xff]
    %v71 = vld [vmem:[#allocation6 + $0x10] sm:$0xff]
    %v72 = vld [vmem:[#allocation6 + $0x18] sm:$0xff]
    %v73 = vld [vmem:[#allocation6 + $0x20] sm:$0xff]
    %v74 = vld [vmem:[#allocation6 + $0x28] sm:$0xff]
    %v75 = vld [vmem:[#allocation6 + $0x30] sm:$0xff]
    %v76 = vld [vmem:[#allocation6 + $0x38] sm:$0xff]
    %v77 = vld [vmem:[#allocation6 + $0x40] sm:$0xff]
    %v78 = vld [vmem:[#allocation6 + $0x48] sm:$0xff]
    %v79 = vld [vmem:[#allocation6 + $0x50] sm:$0xff]
    %v80 = vld [vmem:[#allocation6 + $0x58] sm:$0xff]
    %v81 = vld [vmem:[#allocation6 + $0x60] sm:$0xff]
    %v82 = vld [vmem:[#allocation6 + $0x68] sm:$0xff]
    %v83 = vld [vmem:[#allocation6 + $0x70] sm:$0xff]
    %v84 = vld [vmem:[#allocation6 + $0x78] sm:$0xff]
    %v85 = vld [vmem:[#allocation6 + $0x80] sm:$0xff]
    %v86 = vld [vmem:[#allocation6 + $0x88] sm:$0xff]
    %v87 = vld [vmem:[#allocation6 + $0x90] sm:$0xff]
    %v88 = vld [vmem:[#allocation6 + $0x98] sm:$0xff]
    %v89 = vld [vmem:[#allocation6 + $0xa0] sm:$0xff]
    %v90 = vld [vmem:[#allocation6 + $0xa8] sm:$0xff]
    %v91 = vld [vmem:[#allocation6 + $0xb0] sm:$0xff]
    %v92 = vld [vmem:[#allocation6 + $0xb8] sm:$0xff]
    %v93 = vld [vmem:[#allocation6 + $0xc0] sm:$0xff]
    %v94 = vld [vmem:[#allocation6 + $0xc8] sm:$0xff]
    %v95 = vld [vmem:[#allocation6 + $0xd0] sm:$0xff]
    %v96 = vld [vmem:[#allocation6 + $0xd8] sm:$0xff]
    %v97 = vld [vmem:[#allocation6 + $0xe0] sm:$0xff]
    %v98 = vld [vmem:[#allocation6 + $0xe8] sm:$0xff]
    %v99 = vld [vmem:[#allocation6 + $0xf0] sm:$0xff]
    %v100 = vld [vmem:[#allocation6 + $0xf8] sm:$0xff]
    %v103 = vunpack.c.l.b16 %v67
    %v104 = vunpack.c.h.b16 %v67
    %v105 = vunpack.c.l.b16 %v68
    %v106 = vunpack.c.h.b16 %v68
    %v107 = vpack.c.b16 %v105, %v103
    %v108 = vpack.c.b16 %v106, %v104
    %v143 = vunpack.c.l.b16 %v69
    %v144 = vunpack.c.h.b16 %v69
    %v145 = vunpack.c.l.b16 %v70
    %v146 = vunpack.c.h.b16 %v70
    %v147 = vunpack.c.l.b16 %v71
    %v148 = vunpack.c.h.b16 %v71
    %v149 = vunpack.c.l.b16 %v72
    %v150 = vunpack.c.h.b16 %v72
    %v151 = vunpack.c.l.b16 %v73
    %v152 = vunpack.c.h.b16 %v73
    %v153 = vunpack.c.l.b16 %v74
    %v154 = vunpack.c.h.b16 %v74
    %v155 = vunpack.c.l.b16 %v75
    %v156 = vunpack.c.h.b16 %v75
    %v157 = vunpack.c.l.b16 %v76
    %v158 = vunpack.c.h.b16 %v76
    %v159 = vunpack.c.l.b16 %v77
    %v160 = vunpack.c.h.b16 %v77
    %v161 = vunpack.c.l.b16 %v78
    %v162 = vunpack.c.h.b16 %v78
    %v163 = vunpack.c.l.b16 %v79
    %v164 = vunpack.c.h.b16 %v79
    %v165 = vunpack.c.l.b16 %v80
    %v166 = vunpack.c.h.b16 %v80
    %v167 = vunpack.c.l.b16 %v81
    %v168 = vunpack.c.h.b16 %v81
    %v169 = vunpack.c.l.b16 %v82
    %v170 = vunpack.c.h.b16 %v82
    %v171 = vunpack.c.l.b16 %v83
    %v172 = vunpack.c.h.b16 %v83
    %v173 = vunpack.c.l.b16 %v84
    %v174 = vunpack.c.h.b16 %v84
    %v175 = vunpack.c.l.b16 %v85
    %v176 = vunpack.c.h.b16 %v85
    %v177 = vunpack.c.l.b16 %v86
    %v178 = vunpack.c.h.b16 %v86
    %v179 = vunpack.c.l.b16 %v87
    %v180 = vunpack.c.h.b16 %v87
    %v181 = vunpack.c.l.b16 %v88
    %v182 = vunpack.c.h.b16 %v88
    %v183 = vunpack.c.l.b16 %v89
    %v184 = vunpack.c.h.b16 %v89
    %v185 = vunpack.c.l.b16 %v90
    %v186 = vunpack.c.h.b16 %v90
    %v187 = vunpack.c.l.b16 %v91
    %v188 = vunpack.c.h.b16 %v91
    %v189 = vunpack.c.l.b16 %v92
    %v190 = vunpack.c.h.b16 %v92
    %v191 = vunpack.c.l.b16 %v93
    %v192 = vunpack.c.h.b16 %v93
    %v193 = vunpack.c.l.b16 %v94
    %v194 = vunpack.c.h.b16 %v94
    %v195 = vunpack.c.l.b16 %v95
    %v196 = vunpack.c.h.b16 %v95
    %v197 = vunpack.c.l.b16 %v96
    %v198 = vunpack.c.h.b16 %v96
    %v199 = vunpack.c.l.b16 %v97
    %v200 = vunpack.c.h.b16 %v97
    %v201 = vunpack.c.l.b16 %v98
    %v202 = vunpack.c.h.b16 %v98
    %v203 = vunpack.c.l.b16 %v99
    %v204 = vunpack.c.h.b16 %v99
    %v205 = vunpack.c.l.b16 %v100
    %v206 = vunpack.c.h.b16 %v100
    %v207 = vpack.c.b16 %v145, %v143
    %v208 = vpack.c.b16 %v146, %v144
    %v209 = vpack.c.b16 %v149, %v147
    %v210 = vpack.c.b16 %v150, %v148
    %v211 = vpack.c.b16 %v153, %v151
    %v212 = vpack.c.b16 %v154, %v152
    %v213 = vpack.c.b16 %v157, %v155
    %v214 = vpack.c.b16 %v158, %v156
    %v215 = vpack.c.b16 %v161, %v159
    %v216 = vpack.c.b16 %v162, %v160
    %v217 = vpack.c.b16 %v165, %v163
    %v218 = vpack.c.b16 %v166, %v164
    %v219 = vpack.c.b16 %v169, %v167
    %v220 = vpack.c.b16 %v170, %v168
    %v221 = vpack.c.b16 %v173, %v171
    %v222 = vpack.c.b16 %v174, %v172
    %v223 = vpack.c.b16 %v177, %v175
    %v224 = vpack.c.b16 %v178, %v176
    %v225 = vpack.c.b16 %v181, %v179
    %v226 = vpack.c.b16 %v182, %v180
    %v227 = vpack.c.b16 %v185, %v183
    %v228 = vpack.c.b16 %v186, %v184
    %v229 = vpack.c.b16 %v189, %v187
    %v230 = vpack.c.b16 %v190, %v188
    %v231 = vpack.c.b16 %v193, %v191
    %v232 = vpack.c.b16 %v194, %v192
    %v233 = vpack.c.b16 %v197, %v195
    %v234 = vpack.c.b16 %v198, %v196
    %v235 = vpack.c.b16 %v201, %v199
    %v236 = vpack.c.b16 %v202, %v200
    %v237 = vpack.c.b16 %v205, %v203
    %v238 = vpack.c.b16 %v206, %v204
    %271 = vmatprep.subr.bf16.mxu0 %v222
    %272 = vmatpush1.bf16.msra.mxu0 %v221
    %273 = vmatprep.subr.bf16.mxu0 %v220
    %274 = vmatpush1.bf16.msra.mxu0 %v219
    %275 = vmatprep.subr.bf16.mxu0 %v218
    %276 = vmatpush1.bf16.msra.mxu0 %v217
    %277 = vmatprep.subr.bf16.mxu0 %v216
    %278 = vmatpush1.bf16.msra.mxu0 %v215
    %279 = vmatprep.subr.bf16.mxu0 %v214
    %280 = vmatpush1.bf16.msra.mxu0 %v213
    %281 = vmatprep.subr.bf16.mxu0 %v212
    %282 = vmatpush1.bf16.msra.mxu0 %v211
    %283 = vmatprep.subr.bf16.mxu0 %v210
    %284 = vmatpush1.bf16.msra.mxu0 %v209
    %285 = vmatprep.subr.bf16.mxu0 %v208
    %286 = vmatpush1.bf16.msra.mxu0 %v207
    %287 = vmatprep.subr.bf16.mxu0 %v238
    %288 = vmatpush2.bf16.msra.mxu0 %v237
    %289 = vmatprep.subr.bf16.mxu0 %v236
    %290 = vmatpush2.bf16.msra.mxu0 %v235
    %291 = vmatprep.subr.bf16.mxu0 %v234
    %292 = vmatpush2.bf16.msra.mxu0 %v233
    %293 = vmatprep.subr.bf16.mxu0 %v232
    %294 = vmatpush2.bf16.msra.mxu0 %v231
    %295 = vmatprep.subr.bf16.mxu0 %v230
    %296 = vmatpush2.bf16.msra.mxu0 %v229
    %297 = vmatprep.subr.bf16.mxu0 %v228
    %298 = vmatpush2.bf16.msra.mxu0 %v227
    %299 = vmatprep.subr.bf16.mxu0 %v226
    %300 = vmatpush2.bf16.msra.mxu0 %v225
    %301 = vmatprep.subr.bf16.mxu0 %v224
    %302 = vmatpush2.bf16.msra.mxu0 %v223
    %303 = vmatprep.mubr.bf16.mxu0 %v108
    %304 = vmatmul.mubr.bf16.gmra.mxu0 %v107
    %v305 = vpop.f32.mrf.mxu0
    %v306 = vadd.f32 0.0, %v305
    %v307 = vpop.f32.mrf.mxu0
    %v308 = vadd.f32 0.0, %v307
    %v309 = vpop.f32.mrf.mxu0
    %v310 = vadd.f32 0.0, %v309
    %v311 = vpop.f32.mrf.mxu0
    %v312 = vadd.f32 0.0, %v311
    %313 = vdwg.mxu0
    %v314 = vadd.f32 %v63, %v306
    %v315 = vadd.f32 %v64, %v308
    %v316 = vadd.f32 %v65, %v310
    %v317 = vadd.f32 %v66, %v312
    %318 = vst [vmem:[#allocation2] sm:$0xff] %v314
    %319 = vst [vmem:[#allocation2 + $0x8] sm:$0xff] %v315
    %320 = vst [vmem:[#allocation2 + $0x10] sm:$0xff] %v316
    %321 = vst [vmem:[#allocation2 + $0x18] sm:$0xff] %v317
    // Predicated region
    $region26: #{tpu_custom_call.1} parent=1 // pred_check
      %p322 = pneg %p43
    $region27: #{tpu_custom_call.1} parent=1 // pred_check_branch
      %324 = sbr.rel (%p322) target = $region29
    $region28: #{tpu_custom_call.1} parent=1 // pred_region
      %v325 = vld [vmem:[#allocation2] sm:$0xff]
      %v326 = vld [vmem:[#allocation2 + $0x8] sm:$0xff]
      %v327 = vld [vmem:[#allocation2 + $0x10] sm:$0xff]
      %v328 = vld [vmem:[#allocation2 + $0x18] sm:$0xff]
      %329 = vst [vmem:[#allocation8] sm:$0xff] %v325
      %330 = vst [vmem:[#allocation8 + $0x8] sm:$0xff] %v326
      %331 = vst [vmem:[#allocation8 + $0x10] sm:$0xff] %v327
      %332 = vst [vmem:[#allocation8 + $0x18] sm:$0xff] %v328
    $region29: #{tpu_custom_call.1} parent=1 // pred_fallthru
      _
    // Predicated region
    $region30: #{tpu_custom_call.1} parent=1 // pred_check
      _
    $region31: #{tpu_custom_call.1} parent=1 // pred_check_branch
      %334 = sbr.rel (0) target = $region33
    $region32: #{tpu_custom_call.1} parent=1 // pred_region
      %s336 = ssub.s32 512, 512
      %337 = vsyncadd [#allocation5], %s336
      %s338 = sshll.u32 [#allocation8], 4
      %s339 = int_to_ptr.vmem [resolvable:$true] %s338
      %344 = dma.vmem_to_hbm [thread:$0]  %s339, 512, %s3, [#allocation5], 256, 256, 16
    $region33: #{tpu_custom_call.1} parent=1 // pred_fallthru
      _
    // Predicated region
    $region34: #{tpu_custom_call.1} parent=1 // pred_check
      _
    $region35: #{tpu_custom_call.1} parent=1 // pred_check_branch
      %346 = sbr.rel (0) target = $region37
    $region36: #{tpu_custom_call.1} parent=1 // pred_region
      %347 = dma.done [#allocation5], 512
    $region37: #{tpu_custom_call.1} parent=1 // pred_fallthru
      _
    %348 = vsyncpa [#allocation4], 1
    %349 = vsyncpa [#allocation7], 1
    %350 = vsyncpa [#allocation5], 1

</llo_original>
